<compile_context>
chip_gen: v7x
topology: tpu7x:2x2x1
jax: 0.10.0
libtpu: 0.0.40
codegen_flags: <defaults>
</compile_context>

<pallas_src>
import functools

import jax
import jax.numpy as jnp
from jax.experimental import pallas as pl
from jax.experimental.pallas import tpu as pltpu


def _round_up(x, m):
    return ((x + m - 1) // m) * m


def _pick_tile(dim, align, cap):
    """Return (tile, padded_dim): tile divides padded_dim, both multiples of align."""
    d = _round_up(dim, align)
    if d <= cap:
        return d, d
    return cap, _round_up(d, cap)


# ----------------------------------------------------------------------------
# Fused kernel: for a block of tms sampled 2x2 windows, embed their 4 patches
# on the MXU (whole weight matrix resident in VMEM), apply bias + ReLU, and
# reduce the 4 window elements with max / mean.  Grid = (Ms_pad // tms,).
# ----------------------------------------------------------------------------
def _fused_patch_pool_kernel(x_ref, w_ref, b_ref, o_ref, *, pool_type):
    """x_ref: (4, tms, K) bf16 | w_ref: (K, C) bf16 | b_ref: (1, C) f32
    o_ref: (tms, C) f32 pooled embeddings."""
    w = w_ref[...]
    b = b_ref[...]

    def window_elem(q):
        f = jnp.dot(x_ref[q], w, preferred_element_type=jnp.float32)
        return jnp.maximum(f + b, 0.0)  # backbone epilogue: bias + ReLU

    if pool_type == "max":
        r = jnp.maximum(jnp.maximum(window_elem(0), window_elem(1)),
                        jnp.maximum(window_elem(2), window_elem(3)))
    else:  # "avg": exact 2x2 windows (even Hf/Wf asserted by the wrapper)
        r = (window_elem(0) + window_elem(1)
             + window_elem(2) + window_elem(3)) * 0.25
    o_ref[...] = r.astype(o_ref.dtype)


def fused_patch_embed_pool(cols_g, w_p, b_p, *, tms, pool_type):
    Q, Ms_pad, K_pad = cols_g.shape
    _, C_pad = w_p.shape
    assert Ms_pad % tms == 0
    grid = (Ms_pad // tms,)

    # Derive the scoped-VMEM limit from the real (double-buffered) footprint
    # instead of guessing; keep comfortably under v7x's 64 MiB physical VMEM.
    footprint = (2 * Q * tms * K_pad * 2      # A tiles (bf16), double-buffered
                 + 2 * K_pad * C_pad * 2      # weights (bf16, constant index)
                 + 2 * C_pad * 4              # bias (f32)
                 + 2 * tms * C_pad * 4)       # output tiles (f32)
    assert footprint <= 48 * 1024 * 1024, footprint
    vmem_limit = min(max(footprint + (8 << 20), 32 << 20), 56 << 20)

    kernel = functools.partial(_fused_patch_pool_kernel, pool_type=pool_type)
    return pl.pallas_call(
        kernel,
        out_shape=jax.ShapeDtypeStruct((Ms_pad, C_pad), jnp.float32),
        grid_spec=pltpu.PrefetchScalarGridSpec(
            num_scalar_prefetch=0,
            grid=grid,
            in_specs=[
                pl.BlockSpec((Q, tms, K_pad), lambda i: (0, i, 0)),
                pl.BlockSpec((K_pad, C_pad), lambda i: (0, 0)),
                pl.BlockSpec((1, C_pad), lambda i: (0, 0)),
            ],
            out_specs=pl.BlockSpec((tms, C_pad), lambda i: (i, 0)),
        ),
        compiler_params=pltpu.CompilerParams(
            dimension_semantics=("parallel",),
            vmem_limit_bytes=vmem_limit,
        ),
    )(cols_g, w_p, b_p)


# ----------------------------------------------------------------------------
# Full forward pass (layout glue + index sampling in plain JAX, hot path in
# the fused Pallas kernel above).
# ----------------------------------------------------------------------------
def image_encoder_pool_forward(
    x_nchw, w, b, *, patch, c_feat, pool_type, num_image_embeds, sample_key
):
    N, C_in, H, W = x_nchw.shape
    P = patch
    assert H % P == 0 and W % P == 0
    Hf, Wf = H // P, W // P
    # AdaptiveXPool2d handles odd sizes with uneven windows; this fast path
    # requires even feature maps (true for ResNet50 on standard inputs).
    assert Hf % 2 == 0 and Wf % 2 == 0, "2x2 pool path needs even feature maps"
    Ho, Wo = Hf // 2, Wf // 2
    num_range = Ho * Wo
    S = num_image_embeds
    assert S <= num_range
    K = P * P * C_in

    # NCHW -> NHWC + im2col for the stride-P patch conv (one pass over x;
    # non-overlapping patches => no data expansion).
    x_nhwc = jnp.transpose(x_nchw, (0, 2, 3, 1))
    patches = x_nhwc.reshape(N, Hf, P, Wf, P, C_in)
    patches = jnp.transpose(patches, (0, 1, 3, 2, 4, 5)).reshape(N * Hf * Wf, K)

    # torch.randperm(num_range)[:S], sorted (shared across the batch, exactly
    # as in the PyTorch module).
    # TODO(synk): jax.random.permutation will not reproduce torch.randperm bits.
    perm = jax.random.permutation(sample_key, num_range)
    idx = jnp.sort(perm[:S]).astype(jnp.int32)
    ho, wo = idx // Wo, idx % Wo

    # Sampling hoisted above the backbone matmul: gather only the 4 patch rows
    # (q = dh*2 + dw) of each sampled window, q-major so the kernel's q slices
    # are contiguous slabs.
    # TODO(synk): valid only because the stand-in backbone has no spatial
    # mixing; a real ResNet50 trunk would require the full feature map.
    dh = jnp.array([0, 0, 1, 1], jnp.int32)
    dw = jnp.array([0, 1, 0, 1], jnp.int32)
    n_off = jnp.arange(N, dtype=jnp.int32) * (Hf * Wf)            # (N,)
    row = ((2 * ho[None, None, :] + dh[:, None, None]) * Wf
           + (2 * wo[None, None, :] + dw[:, None, None]))         # (4, 1, S)
    row = row + n_off[None, :, None]                              # (4, N, S)
    cols_g = jnp.take(patches, row.reshape(-1), axis=0)           # (4*N*S, K)
    Ms = N * S
    cols_g = cols_g.reshape(4, Ms, K)

    # Lane-/sublane-dense padding: K, C -> multiples of 128; rows -> multiple
    # of a 16-aligned row tile (bf16 packs 16 rows per sublane group).
    tms, Ms_pad = _pick_tile(Ms, 16, 256)
    K_pad = _round_up(K, 128)
    C_pad = _round_up(c_feat, 128)

    cols_p = jnp.zeros((4, Ms_pad, K_pad), jnp.bfloat16)
    cols_p = cols_p.at[:, :Ms, :K].set(cols_g.astype(jnp.bfloat16))
    w_p = jnp.zeros((K_pad, C_pad), jnp.bfloat16).at[:K, :c_feat].set(
        w.astype(jnp.bfloat16))
    b_p = jnp.zeros((1, C_pad), jnp.float32).at[:, :c_feat].set(
        b.astype(jnp.float32).reshape(1, -1))

    pooled = fused_patch_embed_pool(cols_p, w_p, b_p, tms=tms,
                                    pool_type=pool_type)          # (Ms_pad, C_pad)
    # Only this tiny pooled tensor gets sliced (no full-feature-map copy).
    return pooled[:Ms, :c_feat].reshape(N, S, c_feat)


if __name__ == "__main__":
    # Small shapes consistent with the module's forward.
    N, C_IN, H, W = 2, 4, 16, 16
    PATCH = 4          # stand-in backbone downsampling factor
    C_FEAT = 32        # stand-in feature channels (ResNet50 would be 2048)
    POOL_TYPE = "max"  # args.img_embed_pool_type
    NUM_IMAGE_EMBEDS = 3

    key = jax.random.PRNGKey(0)
    k_x, k_w, k_b, k_s = jax.random.split(key, 4)

    x = jax.random.normal(k_x, (N, C_IN, H, W), dtype=jnp.float32)
    w = (jax.random.normal(k_w, (PATCH * PATCH * C_IN, C_FEAT), dtype=jnp.float32)
         * 0.05)
    b = jax.random.normal(k_b, (1, C_FEAT), dtype=jnp.float32) * 0.01

    out = image_encoder_pool_forward(
        x, w, b,
        patch=PATCH, c_feat=C_FEAT, pool_type=POOL_TYPE,
        num_image_embeds=NUM_IMAGE_EMBEDS, sample_key=k_s,
    )
    out = jax.block_until_ready(out)
    assert out.shape == (N, NUM_IMAGE_EMBEDS, C_FEAT), out.shape

    # Pure-JAX f32 reference (bf16 MXU inputs => loose tolerance).
    Hf, Wf = H // PATCH, W // PATCH
    x_nhwc = jnp.transpose(x, (0, 2, 3, 1))
    cols = x_nhwc.reshape(N, Hf, PATCH, Wf, PATCH, C_IN)
    cols = jnp.transpose(cols, (0, 1, 3, 2, 4, 5)).reshape(-1, PATCH * PATCH * C_IN)
    feats_ref = jnp.maximum(cols @ w + b, 0.0).reshape(N, Hf, Wf, C_FEAT)
    win = feats_ref.reshape(N, Hf // 2, 2, Wf // 2, 2, C_FEAT)
    if POOL_TYPE == "max":
        pooled_ref = jnp.max(win, axis=(2, 4)).reshape(N, -1, C_FEAT)
    else:
        pooled_ref = jnp.mean(win, axis=(2, 4)).reshape(N, -1, C_FEAT)
    perm_ref = jax.random.permutation(k_s, (Hf // 2) * (Wf // 2))
    idx_ref = jnp.sort(perm_ref[:NUM_IMAGE_EMBEDS])
    ref = pooled_ref[:, idx_ref]
    assert jnp.allclose(out, ref, atol=5e-2, rtol=5e-2)

    print("KERNEL_OK")
</pallas_src>

<mosaic_0001>
module attributes {stable_mosaic.version = 11 : i64} {
  func.func @_fused_patch_pool_kernel(%arg0: i32, %arg1: memref<4x16x128xbf16, #tpu.memory_space<vmem>>, %arg2: memref<128x128xbf16, #tpu.memory_space<vmem>>, %arg3: memref<1x128xf32, #tpu.memory_space<vmem>>, %arg4: memref<16x128xf32, #tpu.memory_space<vmem>>) attributes {dimension_semantics = [#tpu.dimension_semantics<parallel>], iteration_bounds = array<i64: 1>, scalar_prefetch = 0 : i64, scratch_operands = 0 : i64, tpu.core_type = #tpu.core_type<tc>, window_params = [{transform_indices = @transform_0, window_bounds = array<i64: 4, 16, 128>}, {pipeline_mode = #tpu.pipeline_mode<synchronous>, transform_indices = @transform_1, window_bounds = array<i64: 128, 128>}, {pipeline_mode = #tpu.pipeline_mode<synchronous>, transform_indices = @transform_2, window_bounds = array<i64: 1, 128>}, {transform_indices = @transform_3, window_bounds = array<i64: 16, 128>}]} {
    %c0 = arith.constant 0 : index
    %c0_0 = arith.constant 0 : index
    %0 = vector.load %arg2[%c0, %c0_0] : memref<128x128xbf16, #tpu.memory_space<vmem>>, vector<128x128xbf16>
    %c0_1 = arith.constant 0 : index
    %c0_2 = arith.constant 0 : index
    %1 = vector.load %arg3[%c0_1, %c0_2] : memref<1x128xf32, #tpu.memory_space<vmem>>, vector<1x128xf32>
    %c0_3 = arith.constant 0 : index
    %c0_4 = arith.constant 0 : index
    %c0_5 = arith.constant 0 : index
    %2 = vector.load %arg1[%c0_3, %c0_4, %c0_5] : memref<4x16x128xbf16, #tpu.memory_space<vmem>>, vector<1x16x128xbf16>
    %3 = vector.shape_cast %2 : vector<1x16x128xbf16> to vector<16x128xbf16>
    %cst = arith.constant dense<0.000000e+00> : vector<16x128xf32>
    %4 = tpu.matmul %3, %0, %cst {dimension_numbers = #tpu.dot_dimension_numbers<[1], [0], [0], [1], [0, 0, 1, 1], [], []>} : vector<16x128xbf16>, vector<128x128xbf16>, vector<16x128xf32> -> vector<16x128xf32>
    %5 = vector.broadcast %1 : vector<1x128xf32> to vector<16x128xf32>
    %6 = arith.addf %4, %5 : vector<16x128xf32>
    %cst_6 = arith.constant 0.000000e+00 : f32
    %7 = vector.broadcast %cst_6 : f32 to vector<16x128xf32>
    %8 = arith.maximumf %6, %7 : vector<16x128xf32>
    %c1 = arith.constant 1 : index
    %c0_7 = arith.constant 0 : index
    %c0_8 = arith.constant 0 : index
    %9 = vector.load %arg1[%c1, %c0_7, %c0_8] : memref<4x16x128xbf16, #tpu.memory_space<vmem>>, vector<1x16x128xbf16>
    %10 = vector.shape_cast %9 : vector<1x16x128xbf16> to vector<16x128xbf16>
    %cst_9 = arith.constant dense<0.000000e+00> : vector<16x128xf32>
    %11 = tpu.matmul %10, %0, %cst_9 {dimension_numbers = #tpu.dot_dimension_numbers<[1], [0], [0], [1], [0, 0, 1, 1], [], []>} : vector<16x128xbf16>, vector<128x128xbf16>, vector<16x128xf32> -> vector<16x128xf32>
    %12 = vector.broadcast %1 : vector<1x128xf32> to vector<16x128xf32>
    %13 = arith.addf %11, %12 : vector<16x128xf32>
    %cst_10 = arith.constant 0.000000e+00 : f32
    %14 = vector.broadcast %cst_10 : f32 to vector<16x128xf32>
    %15 = arith.maximumf %13, %14 : vector<16x128xf32>
    %16 = arith.maximumf %8, %15 : vector<16x128xf32>
    %c2 = arith.constant 2 : index
    %c0_11 = arith.constant 0 : index
    %c0_12 = arith.constant 0 : index
    %17 = vector.load %arg1[%c2, %c0_11, %c0_12] : memref<4x16x128xbf16, #tpu.memory_space<vmem>>, vector<1x16x128xbf16>
    %18 = vector.shape_cast %17 : vector<1x16x128xbf16> to vector<16x128xbf16>
    %cst_13 = arith.constant dense<0.000000e+00> : vector<16x128xf32>
    %19 = tpu.matmul %18, %0, %cst_13 {dimension_numbers = #tpu.dot_dimension_numbers<[1], [0], [0], [1], [0, 0, 1, 1], [], []>} : vector<16x128xbf16>, vector<128x128xbf16>, vector<16x128xf32> -> vector<16x128xf32>
    %20 = vector.broadcast %1 : vector<1x128xf32> to vector<16x128xf32>
    %21 = arith.addf %19, %20 : vector<16x128xf32>
    %cst_14 = arith.constant 0.000000e+00 : f32
    %22 = vector.broadcast %cst_14 : f32 to vector<16x128xf32>
    %23 = arith.maximumf %21, %22 : vector<16x128xf32>
    %c3 = arith.constant 3 : index
    %c0_15 = arith.constant 0 : index
    %c0_16 = arith.constant 0 : index
    %24 = vector.load %arg1[%c3, %c0_15, %c0_16] : memref<4x16x128xbf16, #tpu.memory_space<vmem>>, vector<1x16x128xbf16>
    %25 = vector.shape_cast %24 : vector<1x16x128xbf16> to vector<16x128xbf16>
    %cst_17 = arith.constant dense<0.000000e+00> : vector<16x128xf32>
    %26 = tpu.matmul %25, %0, %cst_17 {dimension_numbers = #tpu.dot_dimension_numbers<[1], [0], [0], [1], [0, 0, 1, 1], [], []>} : vector<16x128xbf16>, vector<128x128xbf16>, vector<16x128xf32> -> vector<16x128xf32>
    %27 = vector.broadcast %1 : vector<1x128xf32> to vector<16x128xf32>
    %28 = arith.addf %26, %27 : vector<16x128xf32>
    %cst_18 = arith.constant 0.000000e+00 : f32
    %29 = vector.broadcast %cst_18 : f32 to vector<16x128xf32>
    %30 = arith.maximumf %28, %29 : vector<16x128xf32>
    %31 = arith.maximumf %23, %30 : vector<16x128xf32>
    %32 = arith.maximumf %16, %31 : vector<16x128xf32>
    %c0_19 = arith.constant 0 : index
    %c0_20 = arith.constant 0 : index
    %33 = vector.load %arg4[%c0_19, %c0_20] : memref<16x128xf32, #tpu.memory_space<vmem>>, vector<16x128xf32>
    tpu.vector_store %arg4[%c0_19, %c0_20], %32 {strides = array<i32>} : memref<16x128xf32, #tpu.memory_space<vmem>>, vector<16x128xf32>,
    return
  }
  func.func @transform_0(%arg0: i32) -> (i32, i32, i32) {
    %c0_i32 = arith.constant 0 : i32
    %c0_i32_0 = arith.constant 0 : i32
    %c0_i32_1 = arith.constant 0 : i32
    return %c0_i32, %arg0, %c0_i32_0 : i32, i32, i32
  }
  func.func @transform_1(%arg0: i32) -> (i32, i32) {
    %c0_i32 = arith.constant 0 : i32
    %c0_i32_0 = arith.constant 0 : i32
    %c0_i32_1 = arith.constant 0 : i32
    return %c0_i32, %c0_i32_0 : i32, i32
  }
  func.func @transform_2(%arg0: i32) -> (i32, i32) {
    %c0_i32 = arith.constant 0 : i32
    %c0_i32_0 = arith.constant 0 : i32
    %c0_i32_1 = arith.constant 0 : i32
    return %c0_i32, %c0_i32_0 : i32, i32
  }
  func.func @transform_3(%arg0: i32) -> (i32, i32) {
    %c0_i32 = arith.constant 0 : i32
    %c0_i32_0 = arith.constant 0 : i32
    return %arg0, %c0_i32 : i32, i32
  }
}

</mosaic_0001>

<llo_original>
// kernel: tpu_custom_call.1
$region0: #{tpu_custom_call.1}
  #allocation0 [shape = 'u32[]', space=smem, size = 0x4, offset = 0x4, fixed_abs, tag = 'smem constant byte address 0x4 - core index']
  #allocation1 [shape = 'u32[144,128]{1,0:T(1,128)}', space=vmem, size = 0x12000, scoped, tag = 'internal scratch']
  %s0 = inlined_call_operand.hbm [shape: bf16[4,16,128], index: 0, kind: input, shape index: {}]
  %s1 = inlined_call_operand.hbm [shape: bf16[128,128], index: 1, kind: input, shape index: {}]
  %s2 = inlined_call_operand.vmem [shape: f32[1,128], index: 2, kind: input, shape index: {}]
  %s3 = inlined_call_operand.hbm [shape: f32[16,128], index: 3, kind: output, shape index: {}]
  %s4 = sld [smem:[#allocation0]]
  $region30: #{tpu_custom_call.1} parent=0
    _
  %s6 = ssub.s32 1, %s4
  %s7 = scalar_select 0, %s6, %s4
  $region1: #{tpu_custom_call.1} parent=0
    #allocation2 [shape = 'u8[16384]{0}', space=vmem, size = 0x4000, scoped, tag = 'input window, operand 0, single buffered']
    #allocation3 [shape = 's32[1]{0}', space=sflag, size = 0x4, scoped, tag = 'scoped memory for tpu_custom_call.1']
    #allocation4 [shape = 's32[1]{0}', space=sflag, size = 0x4, scoped, tag = 'scoped memory for tpu_custom_call.1']
    #allocation5 [shape = 'u8[32768]{0}', space=vmem, size = 0x8000, scoped, tag = 'input window, operand 1, single buffered']
    #allocation6 [shape = 's32[1]{0}', space=sflag, size = 0x4, scoped, tag = 'scoped memory for tpu_custom_call.1']
    #allocation7 [shape = 'u8[8192]{0}', space=vmem, size = 0x2000, scoped, tag = 'output window, operand 0, single buffered']
    %8 = vsyncpa [#allocation3], 0
    %9 = vsyncpa [#allocation6], 0
    %10 = vsyncpa [#allocation4], 0
    // Predicated region
    $region2: #{tpu_custom_call.1} parent=1 // pred_check
      _
    $region3: #{tpu_custom_call.1} parent=1 // pred_check_branch
      %12 = sbr.rel (0) target = $region5
    $region4: #{tpu_custom_call.1} parent=1 // pred_region
      %s14 = ssub.s32 512, 512
      %15 = vsyncadd [#allocation3], %s14
      %s16 = sshll.u32 [#allocation2], 4
      %s17 = int_to_ptr.vmem [resolvable:$true] %s16
      %22 = dma.hbm_to_vmem [thread:$0]  %s0, 512, %s17, [#allocation3], 64, 64, 4
    $region5: #{tpu_custom_call.1} parent=1 // pred_fallthru
      _
    // Predicated region
    $region6: #{tpu_custom_call.1} parent=1 // pred_check
      _
    $region7: #{tpu_custom_call.1} parent=1 // pred_check_branch
      %24 = sbr.rel (0) target = $region9
    $region8: #{tpu_custom_call.1} parent=1 // pred_region
      %s26 = ssub.s32 1024, 1024
      %27 = vsyncadd [#allocation6], %s26
      %s28 = sshll.u32 [#allocation5], 4
      %s29 = int_to_ptr.vmem [resolvable:$true] %s28
      %34 = dma.hbm_to_vmem [thread:$0]  %s1, 1024, %s29, [#allocation6], 64, 64, 4
    $region9: #{tpu_custom_call.1} parent=1 // pred_fallthru
      _
    // Predicated region
    $region10: #{tpu_custom_call.1} parent=1 // pred_check
      _
    $region11: #{tpu_custom_call.1} parent=1 // pred_check_branch
      %36 = sbr.rel (0) target = $region13
    $region12: #{tpu_custom_call.1} parent=1 // pred_region
      _
    $region13: #{tpu_custom_call.1} parent=1 // pred_fallthru
      _
    // Predicated region
    $region14: #{tpu_custom_call.1} parent=1 // pred_check
      _
    $region15: #{tpu_custom_call.1} parent=1 // pred_check_branch
      %38 = sbr.rel (0) target = $region17
    $region16: #{tpu_custom_call.1} parent=1 // pred_region
      %39 = dma.done [#allocation3], 512
    $region17: #{tpu_custom_call.1} parent=1 // pred_fallthru
      _
    // Predicated region
    $region18: #{tpu_custom_call.1} parent=1 // pred_check
      _
    $region19: #{tpu_custom_call.1} parent=1 // pred_check_branch
      %41 = sbr.rel (0) target = $region21
    $region20: #{tpu_custom_call.1} parent=1 // pred_region
      %42 = dma.done [#allocation6], 1024
    $region21: #{tpu_custom_call.1} parent=1 // pred_fallthru
      _
    %v44 = vld [vmem:[#allocation5] sm:$0xf]
    %v45 = vld [vmem:[#allocation5 + $0x4] sm:$0xf]
    %v46 = vld [vmem:[#allocation5 + $0x8] sm:$0xf]
    %v47 = vld [vmem:[#allocation5 + $0xc] sm:$0xf]
    %v48 = vld [vmem:[#allocation5 + $0x10] sm:$0xf]
    %v49 = vld [vmem:[#allocation5 + $0x14] sm:$0xf]
    %v50 = vld [vmem:[#allocation5 + $0x18] sm:$0xf]
    %v51 = vld [vmem:[#allocation5 + $0x1c] sm:$0xf]
    %v52 = vld [vmem:[#allocation5 + $0x20] sm:$0xf]
    %v53 = vld [vmem:[#allocation5 + $0x24] sm:$0xf]
    %v54 = vld [vmem:[#allocation5 + $0x28] sm:$0xf]
    %v55 = vld [vmem:[#allocation5 + $0x2c] sm:$0xf]
    %v56 = vld [vmem:[#allocation5 + $0x30] sm:$0xf]
    %v57 = vld [vmem:[#allocation5 + $0x34] sm:$0xf]
    %v58 = vld [vmem:[#allocation5 + $0x38] sm:$0xf]
    %v59 = vld [vmem:[#allocation5 + $0x3c] sm:$0xf]
    %v60 = vld [vmem:[%s2] sm:$0x1]
    %v61 = vld [vmem:[#allocation2] sm:$0xf]
    %v62 = vld [vmem:[#allocation2 + $0x4] sm:$0xf]
    %v64 = vlaneseq
    %v65 = vshrl.u32 %v64, 7
    %v66 = vsub.s32 0, %v65
    %v67 = vrot.slane %v60, %v66
    %v71 = vunpack.c.l.b16 %v61
    %v72 = vunpack.c.l.b16 %v62
    %v73 = vpack.c.b16 %v72, %v71
    %v91 = vunpack.c.l.b16 %v44
    %v92 = vunpack.c.l.b16 %v45
    %v93 = vunpack.c.l.b16 %v46
    %v94 = vunpack.c.l.b16 %v47
    %v95 = vunpack.c.l.b16 %v48
    %v96 = vunpack.c.l.b16 %v49
    %v97 = vunpack.c.l.b16 %v50
    %v98 = vunpack.c.l.b16 %v51
    %v99 = vunpack.c.l.b16 %v52
    %v100 = vunpack.c.l.b16 %v53
    %v101 = vunpack.c.l.b16 %v54
    %v102 = vunpack.c.l.b16 %v55
    %v103 = vunpack.c.l.b16 %v56
    %v104 = vunpack.c.l.b16 %v57
    %v105 = vunpack.c.l.b16 %v58
    %v106 = vunpack.c.l.b16 %v59
    %v107 = vpack.c.b16 %v92, %v91
    %v108 = vpack.c.b16 %v94, %v93
    %v109 = vpack.c.b16 %v96, %v95
    %v110 = vpack.c.b16 %v98, %v97
    %v111 = vpack.c.b16 %v100, %v99
    %v112 = vpack.c.b16 %v102, %v101
    %v113 = vpack.c.b16 %v104, %v103
    %v114 = vpack.c.b16 %v106, %v105
    %123 = vmatprep.subr.bf16.mxu0 0
    %124 = vmatpush1.bf16.msra.mxu0 %v107
    %125 = vmatprep.subr.bf16.mxu0 0
    %126 = vmatpush1.bf16.msra.mxu0 %v108
    %127 = vmatprep.subr.bf16.mxu0 0
    %128 = vmatpush1.bf16.msra.mxu0 %v109
    %129 = vmatprep.subr.bf16.mxu0 0
    %130 = vmatpush1.bf16.msra.mxu0 %v110
    %131 = vmatprep.subr.bf16.mxu0 0
    %132 = vmatpush1.bf16.msra.mxu0 %v111
    %133 = vmatprep.subr.bf16.mxu0 0
    %134 = vmatpush1.bf16.msra.mxu0 %v112
    %135 = vmatprep.subr.bf16.mxu0 0
    %136 = vmatpush1.bf16.msra.mxu0 %v113
    %137 = vmatprep.subr.bf16.mxu0 0
    %138 = vmatpush1.bf16.msra.mxu0 %v114
    %139 = vmatprep.subr.bf16.mxu0 0
    %140 = vmatpush1.bf16.msra.mxu0 0
    %141 = vmatprep.subr.bf16.mxu0 0
    %142 = vmatpush1.bf16.msra.mxu0 0
    %143 = vmatprep.subr.bf16.mxu0 0
    %144 = vmatpush1.bf16.msra.mxu0 0
    %145 = vmatprep.subr.bf16.mxu0 0
    %146 = vmatpush1.bf16.msra.mxu0 0
    %147 = vmatprep.subr.bf16.mxu0 0
    %148 = vmatpush1.bf16.msra.mxu0 0
    %149 = vmatprep.subr.bf16.mxu0 0
    %150 = vmatpush1.bf16.msra.mxu0 0
    %151 = vmatprep.subr.bf16.mxu0 0
    %152 = vmatpush1.bf16.msra.mxu0 0
    %153 = vmatprep.subr.bf16.mxu0 0
    %154 = vmatpush1.bf16.msra.mxu0 0
    %155 = vmatprep.mubr.bf16.mxu0 0
    %156 = vmatmul.mubr.bf16.gmra.mrb[0].mxu0 %v73
    %v157 = vpop.f32.mrb[0].mxu0
    %v158 = vadd.f32 %v67, %v157
    %v159 = vpop.f32.mrb[0].mxu0
    %v160 = vpop.f32.mrb[0].mxu0
    %v161 = vadd.f32 %v67, %v160
    %v162 = vpop.f32.mrb[0].mxu0
    %163 = vdwg.mxu0
    %v164 = vmax.f32 %v158, 0.0
    %v165 = vmax.f32 %v161, 0.0
    %s166 = scalar_lea.vmem [#allocation2], 8
    %v167 = vld [vmem:[%s166] sm:$0xf]
    %v168 = vld [vmem:[%s166 + $0x4] sm:$0xf]
    %v171 = vunpack.c.l.b16 %v167
    %v172 = vunpack.c.l.b16 %v168
    %v173 = vpack.c.b16 %v172, %v171
    %175 = vmatprep.subr.bf16.mxu0 0
    %176 = vmatpush1.bf16.msra.mxu0 %v107
    %177 = vmatprep.subr.bf16.mxu0 0
    %178 = vmatpush1.bf16.msra.mxu0 %v108
    %179 = vmatprep.subr.bf16.mxu0 0
    %180 = vmatpush1.bf16.msra.mxu0 %v109
    %181 = vmatprep.subr.bf16.mxu0 0
    %182 = vmatpush1.bf16.msra.mxu0 %v110
    %183 = vmatprep.subr.bf16.mxu0 0
    %184 = vmatpush1.bf16.msra.mxu0 %v111
    %185 = vmatprep.subr.bf16.mxu0 0
    %186 = vmatpush1.bf16.msra.mxu0 %v112
    %187 = vmatprep.subr.bf16.mxu0 0
    %188 = vmatpush1.bf16.msra.mxu0 %v113
    %189 = vmatprep.subr.bf16.mxu0 0
    %190 = vmatpush1.bf16.msra.mxu0 %v114
    %191 = vmatprep.subr.bf16.mxu0 0
    %192 = vmatpush1.bf16.msra.mxu0 0
    %193 = vmatprep.subr.bf16.mxu0 0
    %194 = vmatpush1.bf16.msra.mxu0 0
    %195 = vmatprep.subr.bf16.mxu0 0
    %196 = vmatpush1.bf16.msra.mxu0 0
    %197 = vmatprep.subr.bf16.mxu0 0
    %198 = vmatpush1.bf16.msra.mxu0 0
    %199 = vmatprep.subr.bf16.mxu0 0
    %200 = vmatpush1.bf16.msra.mxu0 0
    %201 = vmatprep.subr.bf16.mxu0 0
    %202 = vmatpush1.bf16.msra.mxu0 0
    %203 = vmatprep.subr.bf16.mxu0 0
    %204 = vmatpush1.bf16.msra.mxu0 0
    %205 = vmatprep.subr.bf16.mxu0 0
    %206 = vmatpush1.bf16.msra.mxu0 0
    %207 = vmatprep.mubr.bf16.mxu0 0
    %208 = vmatmul.mubr.bf16.gmra.mrb[0].mxu0 %v173
    %v209 = vpop.f32.mrb[0].mxu0
    %v210 = vadd.f32 %v67, %v209
    %v211 = vpop.f32.mrb[0].mxu0
    %v212 = vpop.f32.mrb[0].mxu0
    %v213 = vadd.f32 %v67, %v212
    %v214 = vpop.f32.mrb[0].mxu0
    %215 = vdwg.mxu0
    %v216 = vmax.f32 %v210, 0.0
    %v217 = vmax.f32 %v213, 0.0
    %v218 = vmax.f32 %v164, %v216
    %v219 = vmax.f32 %v165, %v217
    %s220 = scalar_lea.vmem [#allocation2], 16
    %v221 = vld [vmem:[%s220] sm:$0xf]
    %v222 = vld [vmem:[%s220 + $0x4] sm:$0xf]
    %v225 = vunpack.c.l.b16 %v221
    %v226 = vunpack.c.l.b16 %v222
    %v227 = vpack.c.b16 %v226, %v225
    %229 = vmatprep.subr.bf16.mxu0 0
    %230 = vmatpush1.bf16.msra.mxu0 %v107
    %231 = vmatprep.subr.bf16.mxu0 0
    %232 = vmatpush1.bf16.msra.mxu0 %v108
    %233 = vmatprep.subr.bf16.mxu0 0
    %234 = vmatpush1.bf16.msra.mxu0 %v109
    %235 = vmatprep.subr.bf16.mxu0 0
    %236 = vmatpush1.bf16.msra.mxu0 %v110
    %237 = vmatprep.subr.bf16.mxu0 0
    %238 = vmatpush1.bf16.msra.mxu0 %v111
    %239 = vmatprep.subr.bf16.mxu0 0
    %240 = vmatpush1.bf16.msra.mxu0 %v112
    %241 = vmatprep.subr.bf16.mxu0 0
    %242 = vmatpush1.bf16.msra.mxu0 %v113
    %243 = vmatprep.subr.bf16.mxu0 0
    %244 = vmatpush1.bf16.msra.mxu0 %v114
    %245 = vmatprep.subr.bf16.mxu0 0
    %246 = vmatpush1.bf16.msra.mxu0 0
    %247 = vmatprep.subr.bf16.mxu0 0
    %248 = vmatpush1.bf16.msra.mxu0 0
    %249 = vmatprep.subr.bf16.mxu0 0
    %250 = vmatpush1.bf16.msra.mxu0 0
    %251 = vmatprep.subr.bf16.mxu0 0
    %252 = vmatpush1.bf16.msra.mxu0 0
    %253 = vmatprep.subr.bf16.mxu0 0
    %254 = vmatpush1.bf16.msra.mxu0 0
    %255 = vmatprep.subr.bf16.mxu0 0
    %256 = vmatpush1.bf16.msra.mxu0 0
    %257 = vmatprep.subr.bf16.mxu0 0
    %258 = vmatpush1.bf16.msra.mxu0 0
    %259 = vmatprep.subr.bf16.mxu0 0
    %260 = vmatpush1.bf16.msra.mxu0 0
    %261 = vmatprep.mubr.bf16.mxu0 0
    %262 = vmatmul.mubr.bf16.gmra.mrb[0].mxu0 %v227
    %v263 = vpop.f32.mrb[0].mxu0
    %v264 = vadd.f32 %v67, %v263
    %v265 = vpop.f32.mrb[0].mxu0
    %v266 = vpop.f32.mrb[0].mxu0
    %v267 = vadd.f32 %v67, %v266
    %v268 = vpop.f32.mrb[0].mxu0
    %269 = vdwg.mxu0
    %v270 = vmax.f32 %v264, 0.0
    %v271 = vmax.f32 %v267, 0.0
    %s272 = scalar_lea.vmem [#allocation2], 24
    %v273 = vld [vmem:[%s272] sm:$0xf]
    %v274 = vld [vmem:[%s272 + $0x4] sm:$0xf]
    %v277 = vunpack.c.l.b16 %v273
    %v278 = vunpack.c.l.b16 %v274
    %v279 = vpack.c.b16 %v278, %v277
    %281 = vmatprep.subr.bf16.mxu0 0
    %282 = vmatpush1.bf16.msra.mxu0 %v107
    %283 = vmatprep.subr.bf16.mxu0 0
    %284 = vmatpush1.bf16.msra.mxu0 %v108
    %285 = vmatprep.subr.bf16.mxu0 0
    %286 = vmatpush1.bf16.msra.mxu0 %v109
    %287 = vmatprep.subr.bf16.mxu0 0
    %288 = vmatpush1.bf16.msra.mxu0 %v110
    %289 = vmatprep.subr.bf16.mxu0 0
    %290 = vmatpush1.bf16.msra.mxu0 %v111
    %291 = vmatprep.subr.bf16.mxu0 0
    %292 = vmatpush1.bf16.msra.mxu0 %v112
    %293 = vmatprep.subr.bf16.mxu0 0
    %294 = vmatpush1.bf16.msra.mxu0 %v113
    %295 = vmatprep.subr.bf16.mxu0 0
    %296 = vmatpush1.bf16.msra.mxu0 %v114
    %297 = vmatprep.subr.bf16.mxu0 0
    %298 = vmatpush1.bf16.msra.mxu0 0
    %299 = vmatprep.subr.bf16.mxu0 0
    %300 = vmatpush1.bf16.msra.mxu0 0
    %301 = vmatprep.subr.bf16.mxu0 0
    %302 = vmatpush1.bf16.msra.mxu0 0
    %303 = vmatprep.subr.bf16.mxu0 0
    %304 = vmatpush1.bf16.msra.mxu0 0
    %305 = vmatprep.subr.bf16.mxu0 0
    %306 = vmatpush1.bf16.msra.mxu0 0
    %307 = vmatprep.subr.bf16.mxu0 0
    %308 = vmatpush1.bf16.msra.mxu0 0
    %309 = vmatprep.subr.bf16.mxu0 0
    %310 = vmatpush1.bf16.msra.mxu0 0
    %311 = vmatprep.subr.bf16.mxu0 0
    %312 = vmatpush1.bf16.msra.mxu0 0
    %313 = vmatprep.mubr.bf16.mxu0 0
    %314 = vmatmul.mubr.bf16.gmra.mrb[0].mxu0 %v279
    %v315 = vpop.f32.mrb[0].mxu0
    %v316 = vadd.f32 %v67, %v315
    %v317 = vpop.f32.mrb[0].mxu0
    %v318 = vpop.f32.mrb[0].mxu0
    %v319 = vadd.f32 %v67, %v318
    %v320 = vpop.f32.mrb[0].mxu0
    %321 = vdwg.mxu0
    %v322 = vmax.f32 %v316, 0.0
    %v323 = vmax.f32 %v319, 0.0
    %v324 = vmax.f32 %v270, %v322
    %v325 = vmax.f32 %v271, %v323
    %v326 = vmax.f32 %v218, %v324
    %v327 = vmax.f32 %v219, %v325
    %328 = vst [vmem:[#allocation7] sm:$0xff] %v326
    %329 = vst [vmem:[#allocation7 + $0x8] sm:$0xff] %v327
    // Predicated region
    $region22: #{tpu_custom_call.1} parent=1 // pred_check
      _
    $region23: #{tpu_custom_call.1} parent=1 // pred_check_branch
      %331 = sbr.rel (0) target = $region25
    $region24: #{tpu_custom_call.1} parent=1 // pred_region
      %s333 = ssub.s32 256, 256
      %334 = vsyncadd [#allocation4], %s333
      %s335 = sshll.u32 [#allocation7], 4
      %s336 = int_to_ptr.vmem [resolvable:$true] %s335
      %341 = dma.vmem_to_hbm [thread:$0]  %s336, 256, %s3, [#allocation4], 128, 128, 8
    $region25: #{tpu_custom_call.1} parent=1 // pred_fallthru
      _
    // Predicated region
    $region26: #{tpu_custom_call.1} parent=1 // pred_check
      _
    $region27: #{tpu_custom_call.1} parent=1 // pred_check_branch
      %343 = sbr.rel (0) target = $region29
    $region28: #{tpu_custom_call.1} parent=1 // pred_region
      %344 = dma.done [#allocation4], 256
    $region29: #{tpu_custom_call.1} parent=1 // pred_fallthru
      _
    %345 = vsyncpa [#allocation3], 1
    %346 = vsyncpa [#allocation6], 1
    %347 = vsyncpa [#allocation4], 1

</llo_original>
